<compile_context>
chip_gen: v7x
topology: tpu7x:2x2x1
jax: 0.10.0
libtpu: 0.0.40
codegen_flags: <defaults>
</compile_context>

<pallas_src>
import jax
import jax.numpy as jnp
from jax.experimental import pallas as pl
from jax.experimental.pallas import tpu as pltpu

SQRT2 = 1.4142135623730951


def _round_up(x, m):
    return ((x + m - 1) // m) * m


def _wc_head_kernel(x_ref, wa_ref, ba_ref, w1_ref, b1_ref,
                    gamma_ref, beta_ref, w2_ref, b2_ref, out_ref):
    x = x_ref[...].astype(jnp.float32)                        # (TB, H)

    # --- EmbeddingAttention (mask=None, seq dim of size 1) ----------------
    # score[b] = x[b] . w_attn + b_attn ;  attn_out[b] = x[b] * score[b]
    wa = wa_ref[...].astype(jnp.float32)                      # (1, H)
    score = jnp.sum(x * wa, axis=-1, keepdims=True) + ba_ref[0, 0]  # (TB, 1), bias from SMEM
    a = x * score                                             # (TB, H)

    # --- logit_fc ----------------------------------------------------------
    # Linear(H -> 2H): bf16 operands on the MXU, f32 accumulation.
    h = jnp.dot(a.astype(jnp.bfloat16), w1_ref[...],
                preferred_element_type=jnp.float32) + b1_ref[...]   # (TB, 2H)
    # Exact erf-GeLU (as in LXMERT's GeLU), kept in f32 (v5e VPU/EUP have no bf16).
    g = h * 0.5 * (1.0 + jax.lax.erf(h * (1.0 / SQRT2)))
    # BertLayerNorm(eps=1e-12), biased variance; rsqrt rides the EUP slot.
    mu = jnp.mean(g, axis=-1, keepdims=True)
    var = jnp.mean((g - mu) ** 2, axis=-1, keepdims=True)
    ln = (g - mu) * jax.lax.rsqrt(var + 1e-12)
    ln = ln * gamma_ref[...] + beta_ref[...]
    # Linear(2H -> C_pad): bf16 operands, f32 accumulation, lane-dense output.
    logit = jnp.dot(ln.astype(jnp.bfloat16), w2_ref[...],
                    preferred_element_type=jnp.float32) + b2_ref[...]
    out_ref[...] = logit.astype(out_ref.dtype)


def wc_model_head(x, params):
    """x: (B, H) pooled LXRT encoder output.  Returns logits (B, C) in f32."""
    B, H = x.shape
    H2, C = params["w2"].shape

    # Lane-dense classifier: pad C up to a multiple of 128 lanes.
    C_pad = _round_up(max(C, 1), 128)
    # Batch tile: multiple of 8 sublanes (f32 activations), capped at 128 rows.
    TB = min(128, _round_up(max(B, 1), 8))
    B_pad = _round_up(B, TB)

    # Host/XLA-side prep (in production these would be stored pre-cast/padded).
    x_p = x if B_pad == B else jnp.pad(x, ((0, B_pad - B), (0, 0)))
    w1 = params["w1"].astype(jnp.bfloat16)
    w2 = jnp.pad(params["w2"], ((0, 0), (0, C_pad - C))).astype(jnp.bfloat16)
    b2 = jnp.pad(params["b2"], ((0, 0), (0, C_pad - C)))

    grid = (B_pad // TB,)

    # Activations tiled over batch; weights use a constant index_map so they
    # stay VMEM-resident across grid steps (no re-fetch).
    x_spec = pl.BlockSpec((TB, H), lambda i: (i, 0))
    wa_spec = pl.BlockSpec((1, H), lambda i: (0, 0))
    ba_spec = pl.BlockSpec(memory_space=pltpu.MemorySpace.SMEM)   # scalar bias
    w1_spec = pl.BlockSpec((H, H2), lambda i: (0, 0))
    b1_spec = pl.BlockSpec((1, H2), lambda i: (0, 0))
    gm_spec = pl.BlockSpec((1, H2), lambda i: (0, 0))
    bt_spec = pl.BlockSpec((1, H2), lambda i: (0, 0))
    w2_spec = pl.BlockSpec((H2, C_pad), lambda i: (0, 0))
    b2_spec = pl.BlockSpec((1, C_pad), lambda i: (0, 0))
    out_spec = pl.BlockSpec((TB, C_pad), lambda i: (i, 0))

    cost = pl.CostEstimate(
        flops=2 * B_pad * H * H2 + 2 * B_pad * H2 * C_pad + 12 * B_pad * H2,
        transcendentals=B_pad * H2,                      # erf
        bytes_accessed=(x_p.size * 4 + w1.size * 2 + w2.size * 2
                        + (params["wa"].size + params["b1"].size
                           + params["gamma"].size + params["beta"].size
                           + b2.size) * 4
                        + B_pad * C_pad * 4),
    )

    out = pl.pallas_call(
        _wc_head_kernel,
        out_shape=jax.ShapeDtypeStruct((B_pad, C_pad), jnp.float32),
        grid=grid,
        in_specs=[x_spec, wa_spec, ba_spec, w1_spec, b1_spec,
                  gm_spec, bt_spec, w2_spec, b2_spec],
        out_specs=out_spec,
        compiler_params=pltpu.CompilerParams(
            dimension_semantics=("parallel",)),
        cost_estimate=cost,
    )(x_p, params["wa"], params["ba"], w1, params["b1"],
      params["gamma"], params["beta"], w2, b2)

    return out[:B, :C]


def wc_model_head_ref(x, p):
    """Pure-JAX f32 reference of the same math (for correctness check)."""
    score = x @ p["wa"].reshape(-1, 1) + p["ba"][0, 0]
    a = x * score
    h = a @ p["w1"] + p["b1"]
    g = h * 0.5 * (1.0 + jax.lax.erf(h / SQRT2))
    mu = jnp.mean(g, axis=-1, keepdims=True)
    var = jnp.mean((g - mu) ** 2, axis=-1, keepdims=True)
    ln = (g - mu) / jnp.sqrt(var + 1e-12) * p["gamma"] + p["beta"]
    return ln @ p["w2"] + p["b2"]


def init_params(key, hidden, num_classes):
    """Deterministic synthetic params (bert-style: normal(0, 0.02), LN=1/0)."""
    k = jax.random.split(key, 4)
    return {
        # EmbeddingAttention: nn.Linear(hidden, 1)
        "wa": 0.02 * jax.random.normal(k[0], (1, hidden), jnp.float32),
        "ba": jnp.zeros((1, 1), jnp.float32),
        # logit_fc[0]: Linear(hidden, 2*hidden)
        "w1": 0.02 * jax.random.normal(k[1], (hidden, 2 * hidden), jnp.float32),
        "b1": jnp.zeros((1, 2 * hidden), jnp.float32),
        # logit_fc[2]: BertLayerNorm(2*hidden)
        "gamma": jnp.ones((1, 2 * hidden), jnp.float32),
        "beta": jnp.zeros((1, 2 * hidden), jnp.float32),
        # logit_fc[3]: Linear(2*hidden, num_classes)
        "w2": 0.02 * jax.random.normal(k[2], (2 * hidden, num_classes), jnp.float32),
        "b2": jnp.zeros((1, num_classes), jnp.float32),
    }


if __name__ == "__main__":
    B, H, C = 2, 32, 10
    key = jax.random.PRNGKey(0)
    kx, kp = jax.random.split(key)

    # Stand-in for the pooled LXRTEncoder output (B, hidden).
    x = jax.random.normal(kx, (B, H), jnp.float32)
    params = init_params(kp, H, C)

    out = wc_model_head(x, params)
    out = jax.block_until_ready(out)

    ref = wc_model_head_ref(x, params)
    assert out.shape == (B, C)
    # bf16 matmul operands => loosened tolerance vs. the f32 reference.
    assert jnp.allclose(out, ref, atol=2e-2, rtol=2e-2), "mismatch vs reference"

    print("KERNEL_OK")
</pallas_src>

<mosaic_0001>
module attributes {stable_mosaic.version = 11 : i64} {
  func.func @_wc_head_kernel(%arg0: i32, %arg1: memref<8x32xf32, #tpu.memory_space<vmem>>, %arg2: memref<1x32xf32, #tpu.memory_space<vmem>>, %arg3: memref<1x1xf32, #tpu.memory_space<smem>>, %arg4: memref<32x64xbf16, #tpu.memory_space<vmem>>, %arg5: memref<1x64xf32, #tpu.memory_space<vmem>>, %arg6: memref<1x64xf32, #tpu.memory_space<vmem>>, %arg7: memref<1x64xf32, #tpu.memory_space<vmem>>, %arg8: memref<64x128xbf16, #tpu.memory_space<vmem>>, %arg9: memref<1x128xf32, #tpu.memory_space<vmem>>, %arg10: memref<8x128xf32, #tpu.memory_space<vmem>>) attributes {dimension_semantics = [#tpu.dimension_semantics<parallel>], iteration_bounds = array<i64: 1>, scalar_prefetch = 0 : i64, scratch_operands = 0 : i64, tpu.core_type = #tpu.core_type<tc>, window_params = [{transform_indices = @transform_0, window_bounds = array<i64: 8, 32>}, {pipeline_mode = #tpu.pipeline_mode<synchronous>, transform_indices = @transform_1, window_bounds = array<i64: 1, 32>}, {transform_indices = @transform_2, window_bounds = array<i64: 1, 1>}, {pipeline_mode = #tpu.pipeline_mode<synchronous>, transform_indices = @transform_3, window_bounds = array<i64: 32, 64>}, {pipeline_mode = #tpu.pipeline_mode<synchronous>, transform_indices = @transform_4, window_bounds = array<i64: 1, 64>}, {pipeline_mode = #tpu.pipeline_mode<synchronous>, transform_indices = @transform_5, window_bounds = array<i64: 1, 64>}, {pipeline_mode = #tpu.pipeline_mode<synchronous>, transform_indices = @transform_6, window_bounds = array<i64: 1, 64>}, {pipeline_mode = #tpu.pipeline_mode<synchronous>, transform_indices = @transform_7, window_bounds = array<i64: 64, 128>}, {pipeline_mode = #tpu.pipeline_mode<synchronous>, transform_indices = @transform_8, window_bounds = array<i64: 1, 128>}, {transform_indices = @transform_9, window_bounds = array<i64: 8, 128>}]} {
    %c0 = arith.constant 0 : index
    %c0_0 = arith.constant 0 : index
    %0 = vector.load %arg1[%c0, %c0_0] : memref<8x32xf32, #tpu.memory_space<vmem>>, vector<8x32xf32>
    %c0_1 = arith.constant 0 : index
    %c0_2 = arith.constant 0 : index
    %1 = vector.load %arg2[%c0_1, %c0_2] : memref<1x32xf32, #tpu.memory_space<vmem>>, vector<1x32xf32>
    %2 = vector.broadcast %1 : vector<1x32xf32> to vector<8x32xf32>
    %3 = arith.mulf %0, %2 : vector<8x32xf32>
    %cst = arith.constant dense<0.000000e+00> : vector<8xf32>
    %4 = vector.multi_reduction <add>, %3, %cst [1] : vector<8x32xf32> to vector<8xf32>
    %5 = vector.shape_cast %4 : vector<8xf32> to vector<8x1xf32>
    %c0_3 = arith.constant 0 : index
    %c0_4 = arith.constant 0 : index
    %6 = memref.load %arg3[%c0_3, %c0_4] : memref<1x1xf32, #tpu.memory_space<smem>>
    %7 = vector.broadcast %6 : f32 to vector<8x1xf32>
    %8 = arith.addf %5, %7 : vector<8x1xf32>
    %9 = vector.broadcast %8 : vector<8x1xf32> to vector<8x32xf32>
    %10 = arith.mulf %0, %9 : vector<8x32xf32>
    %11 = arith.truncf %10 : vector<8x32xf32> to vector<8x32xbf16>
    %c0_5 = arith.constant 0 : index
    %c0_6 = arith.constant 0 : index
    %12 = vector.load %arg4[%c0_5, %c0_6] : memref<32x64xbf16, #tpu.memory_space<vmem>>, vector<32x64xbf16>
    %cst_7 = arith.constant dense<0.000000e+00> : vector<8x64xf32>
    %13 = tpu.matmul %11, %12, %cst_7 {dimension_numbers = #tpu.dot_dimension_numbers<[1], [0], [0], [1], [0, 0, 1, 1], [], []>} : vector<8x32xbf16>, vector<32x64xbf16>, vector<8x64xf32> -> vector<8x64xf32>
    %c0_8 = arith.constant 0 : index
    %c0_9 = arith.constant 0 : index
    %14 = vector.load %arg5[%c0_8, %c0_9] : memref<1x64xf32, #tpu.memory_space<vmem>>, vector<1x64xf32>
    %15 = vector.broadcast %14 : vector<1x64xf32> to vector<8x64xf32>
    %16 = arith.addf %13, %15 : vector<8x64xf32>
    %cst_10 = arith.constant 5.000000e-01 : f32
    %17 = vector.broadcast %cst_10 : f32 to vector<8x64xf32>
    %18 = arith.mulf %16, %17 : vector<8x64xf32>
    %cst_11 = arith.constant 0.707106769 : f32
    %19 = vector.broadcast %cst_11 : f32 to vector<8x64xf32>
    %20 = arith.mulf %16, %19 : vector<8x64xf32>
    %21 = math.erf %20 : vector<8x64xf32>
    %cst_12 = arith.constant 1.000000e+00 : f32
    %22 = vector.broadcast %cst_12 : f32 to vector<8x64xf32>
    %23 = arith.addf %22, %21 : vector<8x64xf32>
    %24 = arith.mulf %18, %23 : vector<8x64xf32>
    %cst_13 = arith.constant dense<0.000000e+00> : vector<8xf32>
    %25 = vector.multi_reduction <add>, %24, %cst_13 [1] : vector<8x64xf32> to vector<8xf32>
    %26 = vector.shape_cast %25 : vector<8xf32> to vector<8x1xf32>
    %cst_14 = arith.constant 6.400000e+01 : f32
    %27 = vector.broadcast %cst_14 : f32 to vector<8x1xf32>
    %28 = arith.divf %26, %27 : vector<8x1xf32>
    %29 = vector.broadcast %28 : vector<8x1xf32> to vector<8x64xf32>
    %30 = arith.subf %24, %29 : vector<8x64xf32>
    %31 = arith.mulf %30, %30 : vector<8x64xf32>
    %cst_15 = arith.constant dense<0.000000e+00> : vector<8xf32>
    %32 = vector.multi_reduction <add>, %31, %cst_15 [1] : vector<8x64xf32> to vector<8xf32>
    %33 = vector.shape_cast %32 : vector<8xf32> to vector<8x1xf32>
    %cst_16 = arith.constant 6.400000e+01 : f32
    %34 = vector.broadcast %cst_16 : f32 to vector<8x1xf32>
    %35 = arith.divf %33, %34 : vector<8x1xf32>
    %36 = vector.broadcast %28 : vector<8x1xf32> to vector<8x64xf32>
    %37 = arith.subf %24, %36 : vector<8x64xf32>
    %cst_17 = arith.constant 9.99999996E-13 : f32
    %38 = vector.broadcast %cst_17 : f32 to vector<8x1xf32>
    %39 = arith.addf %35, %38 : vector<8x1xf32>
    %40 = math.rsqrt %39 : vector<8x1xf32>
    %41 = vector.broadcast %40 : vector<8x1xf32> to vector<8x64xf32>
    %42 = arith.mulf %37, %41 : vector<8x64xf32>
    %c0_18 = arith.constant 0 : index
    %c0_19 = arith.constant 0 : index
    %43 = vector.load %arg6[%c0_18, %c0_19] : memref<1x64xf32, #tpu.memory_space<vmem>>, vector<1x64xf32>
    %44 = vector.broadcast %43 : vector<1x64xf32> to vector<8x64xf32>
    %45 = arith.mulf %42, %44 : vector<8x64xf32>
    %c0_20 = arith.constant 0 : index
    %c0_21 = arith.constant 0 : index
    %46 = vector.load %arg7[%c0_20, %c0_21] : memref<1x64xf32, #tpu.memory_space<vmem>>, vector<1x64xf32>
    %47 = vector.broadcast %46 : vector<1x64xf32> to vector<8x64xf32>
    %48 = arith.addf %45, %47 : vector<8x64xf32>
    %49 = arith.truncf %48 : vector<8x64xf32> to vector<8x64xbf16>
    %c0_22 = arith.constant 0 : index
    %c0_23 = arith.constant 0 : index
    %50 = vector.load %arg8[%c0_22, %c0_23] : memref<64x128xbf16, #tpu.memory_space<vmem>>, vector<64x128xbf16>
    %cst_24 = arith.constant dense<0.000000e+00> : vector<8x128xf32>
    %51 = tpu.matmul %49, %50, %cst_24 {dimension_numbers = #tpu.dot_dimension_numbers<[1], [0], [0], [1], [0, 0, 1, 1], [], []>} : vector<8x64xbf16>, vector<64x128xbf16>, vector<8x128xf32> -> vector<8x128xf32>
    %c0_25 = arith.constant 0 : index
    %c0_26 = arith.constant 0 : index
    %52 = vector.load %arg9[%c0_25, %c0_26] : memref<1x128xf32, #tpu.memory_space<vmem>>, vector<1x128xf32>
    %53 = vector.broadcast %52 : vector<1x128xf32> to vector<8x128xf32>
    %54 = arith.addf %51, %53 : vector<8x128xf32>
    %c0_27 = arith.constant 0 : index
    %c0_28 = arith.constant 0 : index
    %55 = vector.load %arg10[%c0_27, %c0_28] : memref<8x128xf32, #tpu.memory_space<vmem>>, vector<8x128xf32>
    tpu.vector_store %arg10[%c0_27, %c0_28], %54 {strides = array<i32>} : memref<8x128xf32, #tpu.memory_space<vmem>>, vector<8x128xf32>,
    return
  }
  func.func @transform_0(%arg0: i32) -> (i32, i32) {
    %c0_i32 = arith.constant 0 : i32
    %c0_i32_0 = arith.constant 0 : i32
    return %arg0, %c0_i32 : i32, i32
  }
  func.func @transform_1(%arg0: i32) -> (i32, i32) {
    %c0_i32 = arith.constant 0 : i32
    %c0_i32_0 = arith.constant 0 : i32
    %c0_i32_1 = arith.constant 0 : i32
    return %c0_i32, %c0_i32_0 : i32, i32
  }
  func.func @transform_2(%arg0: i32) -> (i32, i32) {
    %c0_i32 = arith.constant 0 : i32
    %c0_i32_0 = arith.constant 0 : i32
    %c0_i32_1 = arith.constant 0 : i32
    return %c0_i32, %c0_i32_0 : i32, i32
  }
  func.func @transform_3(%arg0: i32) -> (i32, i32) {
    %c0_i32 = arith.constant 0 : i32
    %c0_i32_0 = arith.constant 0 : i32
    %c0_i32_1 = arith.constant 0 : i32
    return %c0_i32, %c0_i32_0 : i32, i32
  }
  func.func @transform_4(%arg0: i32) -> (i32, i32) {
    %c0_i32 = arith.constant 0 : i32
    %c0_i32_0 = arith.constant 0 : i32
    %c0_i32_1 = arith.constant 0 : i32
    return %c0_i32, %c0_i32_0 : i32, i32
  }
  func.func @transform_5(%arg0: i32) -> (i32, i32) {
    %c0_i32 = arith.constant 0 : i32
    %c0_i32_0 = arith.constant 0 : i32
    %c0_i32_1 = arith.constant 0 : i32
    return %c0_i32, %c0_i32_0 : i32, i32
  }
  func.func @transform_6(%arg0: i32) -> (i32, i32) {
    %c0_i32 = arith.constant 0 : i32
    %c0_i32_0 = arith.constant 0 : i32
    %c0_i32_1 = arith.constant 0 : i32
    return %c0_i32, %c0_i32_0 : i32, i32
  }
  func.func @transform_7(%arg0: i32) -> (i32, i32) {
    %c0_i32 = arith.constant 0 : i32
    %c0_i32_0 = arith.constant 0 : i32
    %c0_i32_1 = arith.constant 0 : i32
    return %c0_i32, %c0_i32_0 : i32, i32
  }
  func.func @transform_8(%arg0: i32) -> (i32, i32) {
    %c0_i32 = arith.constant 0 : i32
    %c0_i32_0 = arith.constant 0 : i32
    %c0_i32_1 = arith.constant 0 : i32
    return %c0_i32, %c0_i32_0 : i32, i32
  }
  func.func @transform_9(%arg0: i32) -> (i32, i32) {
    %c0_i32 = arith.constant 0 : i32
    %c0_i32_0 = arith.constant 0 : i32
    return %arg0, %c0_i32 : i32, i32
  }
}

</mosaic_0001>

<llo_original>
// kernel: tpu_custom_call.1
$region0: #{tpu_custom_call.1}
  #allocation0 [shape = 'u32[]', space=smem, size = 0x4, offset = 0x4, fixed_abs, tag = 'smem constant byte address 0x4 - core index']
  #allocation1 [shape = 'u32[144,128]{1,0:T(1,128)}', space=vmem, size = 0x12000, scoped, tag = 'internal scratch']
  #allocation2 [shape = 'f32[1,1]{1,0:T(1,128)S(6)}', space=smem, size = 0x200, scoped, tag = 'scoped memory for tpu_custom_call.1']
  %s0 = inlined_call_operand.hbm [shape: f32[8,32], index: 0, kind: input, shape index: {}]
  %s1 = inlined_call_operand.vmem [shape: f32[1,32], index: 1, kind: input, shape index: {}]
  %s2 = inlined_call_operand.<no memory space> [shape: f32[1,1], index: 2, kind: input, shape index: {}]
  %s3 = inlined_call_operand.hbm [shape: bf16[32,64], index: 3, kind: input, shape index: {}]
  %s4 = inlined_call_operand.vmem [shape: f32[1,64], index: 4, kind: input, shape index: {}]
  %s5 = inlined_call_operand.vmem [shape: f32[1,64], index: 5, kind: input, shape index: {}]
  %s6 = inlined_call_operand.vmem [shape: f32[1,64], index: 6, kind: input, shape index: {}]
  %s7 = inlined_call_operand.hbm [shape: bf16[64,128], index: 7, kind: input, shape index: {}]
  %s8 = inlined_call_operand.vmem [shape: f32[1,128], index: 8, kind: input, shape index: {}]
  %s9 = inlined_call_operand.hbm [shape: f32[8,128], index: 9, kind: output, shape index: {}]
  %s10 = sld [smem:[#allocation0]]
  $region58: #{tpu_custom_call.1} parent=0
    _
  %s12 = ssub.s32 1, %s10
  %s13 = scalar_select 0, %s12, %s10
  %14 = sst [smem:[#allocation2]] %s2
  $region1: #{tpu_custom_call.1} parent=0
    #allocation3 [shape = 'u8[4096]{0}', space=vmem, size = 0x1000, scoped, tag = 'input window, operand 0, single buffered']
    #allocation4 [shape = 's32[1]{0}', space=sflag, size = 0x4, scoped, tag = 'scoped memory for tpu_custom_call.1']
    #allocation5 [shape = 's32[1]{0}', space=sflag, size = 0x4, scoped, tag = 'scoped memory for tpu_custom_call.1']
    #allocation6 [shape = 'u8[8192]{0}', space=vmem, size = 0x2000, scoped, tag = 'input window, operand 3, single buffered']
    #allocation7 [shape = 's32[1]{0}', space=sflag, size = 0x4, scoped, tag = 'scoped memory for tpu_custom_call.1']
    #allocation8 [shape = 'u8[16384]{0}', space=vmem, size = 0x4000, scoped, tag = 'input window, operand 7, single buffered']
    #allocation9 [shape = 'u8[4096]{0}', space=vmem, size = 0x1000, scoped, tag = 'output window, operand 0, single buffered']
    %15 = vsyncpa [#allocation4], 0
    %16 = vsyncpa [#allocation7], 0
    %17 = vsyncpa [#allocation5], 0
    // Predicated region
    $region2: #{tpu_custom_call.1} parent=1 // pred_check
      _
    $region3: #{tpu_custom_call.1} parent=1 // pred_check_branch
      %19 = sbr.rel (0) target = $region5
    $region4: #{tpu_custom_call.1} parent=1 // pred_region
      %s21 = ssub.s32 128, 128
      %22 = vsyncadd [#allocation4], %s21
      %s24 = sshll.u32 [#allocation3], 4
      %s25 = int_to_ptr.vmem [resolvable:$true] %s24
      %27 = dma.hbm_to_vmem [thread:$0]  %s0, 128, %s25, [#allocation4]
    $region5: #{tpu_custom_call.1} parent=1 // pred_fallthru
      _
    // Predicated region
    $region6: #{tpu_custom_call.1} parent=1 // pred_check
      _
    $region7: #{tpu_custom_call.1} parent=1 // pred_check_branch
      %29 = sbr.rel (0) target = $region9
    $region8: #{tpu_custom_call.1} parent=1 // pred_region
      _
    $region9: #{tpu_custom_call.1} parent=1 // pred_fallthru
      _
    // Predicated region
    $region10: #{tpu_custom_call.1} parent=1 // pred_check
      _
    $region11: #{tpu_custom_call.1} parent=1 // pred_check_branch
      %31 = sbr.rel (0) target = $region13
    $region12: #{tpu_custom_call.1} parent=1 // pred_region
      _
    $region13: #{tpu_custom_call.1} parent=1 // pred_fallthru
      _
    // Predicated region
    $region14: #{tpu_custom_call.1} parent=1 // pred_check
      _
    $region15: #{tpu_custom_call.1} parent=1 // pred_check_branch
      %33 = sbr.rel (0) target = $region17
    $region16: #{tpu_custom_call.1} parent=1 // pred_region
      %s35 = ssub.s32 256, 256
      %36 = vsyncadd [#allocation7], %s35
      %s37 = sshll.u32 [#allocation6], 4
      %s38 = int_to_ptr.vmem [resolvable:$true] %s37
      %43 = dma.hbm_to_vmem [thread:$0]  %s3, 256, %s38, [#allocation7], 64, 64, 4
    $region17: #{tpu_custom_call.1} parent=1 // pred_fallthru
      _
    // Predicated region
    $region18: #{tpu_custom_call.1} parent=1 // pred_check
      _
    $region19: #{tpu_custom_call.1} parent=1 // pred_check_branch
      %45 = sbr.rel (0) target = $region21
    $region20: #{tpu_custom_call.1} parent=1 // pred_region
      _
    $region21: #{tpu_custom_call.1} parent=1 // pred_fallthru
      _
    // Predicated region
    $region22: #{tpu_custom_call.1} parent=1 // pred_check
      _
    $region23: #{tpu_custom_call.1} parent=1 // pred_check_branch
      %47 = sbr.rel (0) target = $region25
    $region24: #{tpu_custom_call.1} parent=1 // pred_region
      _
    $region25: #{tpu_custom_call.1} parent=1 // pred_fallthru
      _
    // Predicated region
    $region26: #{tpu_custom_call.1} parent=1 // pred_check
      _
    $region27: #{tpu_custom_call.1} parent=1 // pred_check_branch
      %49 = sbr.rel (0) target = $region29
    $region28: #{tpu_custom_call.1} parent=1 // pred_region
      _
    $region29: #{tpu_custom_call.1} parent=1 // pred_fallthru
      _
    // Predicated region
    $region30: #{tpu_custom_call.1} parent=1 // pred_check
      _
    $region31: #{tpu_custom_call.1} parent=1 // pred_check_branch
      %51 = sbr.rel (0) target = $region33
    $region32: #{tpu_custom_call.1} parent=1 // pred_region
      %s53 = ssub.s32 512, 512
      %54 = vsyncadd [#allocation7], %s53
      %s55 = sshll.u32 [#allocation8], 4
      %s56 = int_to_ptr.vmem [resolvable:$true] %s55
      %61 = dma.hbm_to_vmem [thread:$0]  %s7, 512, %s56, [#allocation7], 64, 64, 4
    $region33: #{tpu_custom_call.1} parent=1 // pred_fallthru
      _
    // Predicated region
    $region34: #{tpu_custom_call.1} parent=1 // pred_check
      _
    $region35: #{tpu_custom_call.1} parent=1 // pred_check_branch
      %63 = sbr.rel (0) target = $region37
    $region36: #{tpu_custom_call.1} parent=1 // pred_region
      _
    $region37: #{tpu_custom_call.1} parent=1 // pred_fallthru
      _
    // Predicated region
    $region38: #{tpu_custom_call.1} parent=1 // pred_check
      _
    $region39: #{tpu_custom_call.1} parent=1 // pred_check_branch
      %65 = sbr.rel (0) target = $region41
    $region40: #{tpu_custom_call.1} parent=1 // pred_region
      %66 = dma.done [#allocation4], 128
    $region41: #{tpu_custom_call.1} parent=1 // pred_fallthru
      _
    // Predicated region
    $region42: #{tpu_custom_call.1} parent=1 // pred_check
      _
    $region43: #{tpu_custom_call.1} parent=1 // pred_check_branch
      %68 = sbr.rel (0) target = $region45
    $region44: #{tpu_custom_call.1} parent=1 // pred_region
      %69 = dma.done [#allocation7], 256
    $region45: #{tpu_custom_call.1} parent=1 // pred_fallthru
      _
    // Predicated region
    $region46: #{tpu_custom_call.1} parent=1 // pred_check
      _
    $region47: #{tpu_custom_call.1} parent=1 // pred_check_branch
      %71 = sbr.rel (0) target = $region49
    $region48: #{tpu_custom_call.1} parent=1 // pred_region
      %72 = dma.done [#allocation7], 512
    $region49: #{tpu_custom_call.1} parent=1 // pred_fallthru
      _
    %v74 = vld [vmem:[#allocation3] sm:$0xff]
    %v75 = vld [vmem:[%s1] sm:$0x1]
    %v77 = vlaneseq
    %v78 = vshrl.u32 %v77, 7
    %v79 = vsub.s32 0, %v78
    %v80 = vrot.slane %v75, %v79
    %v82 = vmul.f32 %v74, %v80
    %vm83 = vcmask 261120
    %v84 = vsel %vm83, %v82, 0.0
    %85 = vadd.xlane.f32.xlu0 %v84
    %v86 = vpop.xlane.xlu0 %85
    %s87 = sld [smem:[#allocation2]]
    %v88 = vstv %s87
    %v89 = vadd.f32 %v86, %v88
    %v90 = vmul.f32 %v74, %v89
    %v91 = vpack.c.bf16 %v90, %v90
    %v92 = vld [vmem:[#allocation6] sm:$0xf]
    %v93 = vld [vmem:[#allocation6 + $0x4] sm:$0xf]
    %v94 = vld [vmem:[#allocation6 + $0x8] sm:$0xf]
    %v95 = vld [vmem:[#allocation6 + $0xc] sm:$0xf]
    %v96 = vld [vmem:[%s4] sm:$0x1]
    %v98 = vlaneseq
    %v99 = vshrl.u32 %v98, 7
    %v100 = vsub.s32 0, %v99
    %v101 = vrot.slane %v96, %v100
    %v107 = vunpack.c.l.b16 %v92
    %v108 = vunpack.c.l.b16 %v93
    %v109 = vunpack.c.l.b16 %v94
    %v110 = vunpack.c.l.b16 %v95
    %v111 = vpack.c.b16 %v108, %v107
    %v112 = vpack.c.b16 %v110, %v109
    %v116 = vsel %vm83, %v91, 0
    %118 = vmatprep.subr.bf16.mxu0 0
    %119 = vmatpush1.bf16.msra.mxu0 %v111
    %120 = vmatprep.subr.bf16.mxu0 0
    %121 = vmatpush1.bf16.msra.mxu0 %v112
    %122 = vmatprep.subr.bf16.mxu0 0
    %123 = vmatpush1.bf16.msra.mxu0 0
    %124 = vmatprep.subr.bf16.mxu0 0
    %125 = vmatpush1.bf16.msra.mxu0 0
    %126 = vmatprep.subr.bf16.mxu0 0
    %127 = vmatpush1.bf16.msra.mxu0 0
    %128 = vmatprep.subr.bf16.mxu0 0
    %129 = vmatpush1.bf16.msra.mxu0 0
    %130 = vmatprep.subr.bf16.mxu0 0
    %131 = vmatpush1.bf16.msra.mxu0 0
    %132 = vmatprep.subr.bf16.mxu0 0
    %133 = vmatpush1.bf16.msra.mxu0 0
    %134 = vmatprep.subr.bf16.mxu0 0
    %135 = vmatpush1.bf16.msra.mxu0 0
    %136 = vmatprep.subr.bf16.mxu0 0
    %137 = vmatpush1.bf16.msra.mxu0 0
    %138 = vmatprep.subr.bf16.mxu0 0
    %139 = vmatpush1.bf16.msra.mxu0 0
    %140 = vmatprep.subr.bf16.mxu0 0
    %141 = vmatpush1.bf16.msra.mxu0 0
    %142 = vmatprep.subr.bf16.mxu0 0
    %143 = vmatpush1.bf16.msra.mxu0 0
    %144 = vmatprep.subr.bf16.mxu0 0
    %145 = vmatpush1.bf16.msra.mxu0 0
    %146 = vmatprep.subr.bf16.mxu0 0
    %147 = vmatpush1.bf16.msra.mxu0 0
    %148 = vmatprep.subr.bf16.mxu0 0
    %149 = vmatpush1.bf16.msra.mxu0 0
    %150 = vmatprep.mubr.bf16.mxu0 0
    %151 = vmatmul.mubr.bf16.gmra.mrb[0].mxu0 %v116
    %v152 = vpop.f32.mrb[0].mxu0
    %v153 = vadd.f32 %v101, %v152
    %v154 = vpop.f32.mrb[0].mxu0
    %v155 = vpop.f32.mrb[0].mxu0
    %v156 = vpop.f32.mrb[0].mxu0
    %157 = vdwg.mxu0
    %v158 = vmul.f32 %v153, 0.5
    %v159 = vmul.f32 %v153, 0.70710677
    %v160 = verf.f32.pop %v159
    %v161 = vadd.f32 %v160, 1.0
    %v162 = vmul.f32 %v158, %v161
    %vm163 = vcmask 523264
    %v164 = vsel %vm163, %v162, 0.0
    %165 = vadd.xlane.f32.xlu0 %v164
    %v166 = vpop.xlane.xlu0 %165
    %v167 = vrcp.pop 64.0
    %v168 = vmul.f32 %v166, %v167
    %v169 = vsub.f32 %v162, %v168
    %v170 = vmul.f32 %v169, %v169
    %v171 = vsel %vm163, %v170, 0.0
    %172 = vadd.xlane.f32.xlu0 %v171
    %v173 = vpop.xlane.xlu0 %172
    %v174 = vmul.f32 %v173, %v167
    %v175 = vadd.f32 %v174, 1e-12
    %v176 = vrsqrt.pop %v175
    %v177 = vmul.f32 %v169, %v176
    %v178 = vld [vmem:[%s5] sm:$0x1]
    %v180 = vlaneseq
    %v181 = vshrl.u32 %v180, 7
    %v182 = vsub.s32 0, %v181
    %v183 = vrot.slane %v178, %v182
    %v185 = vmul.f32 %v177, %v183
    %v186 = vld [vmem:[%s6] sm:$0x1]
    %v188 = vlaneseq
    %v189 = vshrl.u32 %v188, 7
    %v190 = vsub.s32 0, %v189
    %v191 = vrot.slane %v186, %v190
    %v193 = vadd.f32 %v185, %v191
    %v194 = vpack.c.bf16 %v193, %v193
    %v195 = vld [vmem:[#allocation8] sm:$0xf]
    %v196 = vld [vmem:[#allocation8 + $0x4] sm:$0xf]
    %v197 = vld [vmem:[#allocation8 + $0x8] sm:$0xf]
    %v198 = vld [vmem:[#allocation8 + $0xc] sm:$0xf]
    %v199 = vld [vmem:[#allocation8 + $0x10] sm:$0xf]
    %v200 = vld [vmem:[#allocation8 + $0x14] sm:$0xf]
    %v201 = vld [vmem:[#allocation8 + $0x18] sm:$0xf]
    %v202 = vld [vmem:[#allocation8 + $0x1c] sm:$0xf]
    %v203 = vld [vmem:[%s8] sm:$0x1]
    %v205 = vlaneseq
    %v206 = vshrl.u32 %v205, 7
    %v207 = vsub.s32 0, %v206
    %v208 = vrot.slane %v203, %v207
    %v218 = vunpack.c.l.b16 %v195
    %v219 = vunpack.c.l.b16 %v196
    %v220 = vunpack.c.l.b16 %v197
    %v221 = vunpack.c.l.b16 %v198
    %v222 = vunpack.c.l.b16 %v199
    %v223 = vunpack.c.l.b16 %v200
    %v224 = vunpack.c.l.b16 %v201
    %v225 = vunpack.c.l.b16 %v202
    %v226 = vpack.c.b16 %v219, %v218
    %v227 = vpack.c.b16 %v221, %v220
    %v228 = vpack.c.b16 %v223, %v222
    %v229 = vpack.c.b16 %v225, %v224
    %v235 = vsel %vm163, %v194, 0
    %237 = vmatprep.subr.bf16.mxu0 0
    %238 = vmatpush1.bf16.msra.mxu0 %v226
    %239 = vmatprep.subr.bf16.mxu0 0
    %240 = vmatpush1.bf16.msra.mxu0 %v227
    %241 = vmatprep.subr.bf16.mxu0 0
    %242 = vmatpush1.bf16.msra.mxu0 %v228
    %243 = vmatprep.subr.bf16.mxu0 0
    %244 = vmatpush1.bf16.msra.mxu0 %v229
    %245 = vmatprep.subr.bf16.mxu0 0
    %246 = vmatpush1.bf16.msra.mxu0 0
    %247 = vmatprep.subr.bf16.mxu0 0
    %248 = vmatpush1.bf16.msra.mxu0 0
    %249 = vmatprep.subr.bf16.mxu0 0
    %250 = vmatpush1.bf16.msra.mxu0 0
    %251 = vmatprep.subr.bf16.mxu0 0
    %252 = vmatpush1.bf16.msra.mxu0 0
    %253 = vmatprep.subr.bf16.mxu0 0
    %254 = vmatpush1.bf16.msra.mxu0 0
    %255 = vmatprep.subr.bf16.mxu0 0
    %256 = vmatpush1.bf16.msra.mxu0 0
    %257 = vmatprep.subr.bf16.mxu0 0
    %258 = vmatpush1.bf16.msra.mxu0 0
    %259 = vmatprep.subr.bf16.mxu0 0
    %260 = vmatpush1.bf16.msra.mxu0 0
    %261 = vmatprep.subr.bf16.mxu0 0
    %262 = vmatpush1.bf16.msra.mxu0 0
    %263 = vmatprep.subr.bf16.mxu0 0
    %264 = vmatpush1.bf16.msra.mxu0 0
    %265 = vmatprep.subr.bf16.mxu0 0
    %266 = vmatpush1.bf16.msra.mxu0 0
    %267 = vmatprep.subr.bf16.mxu0 0
    %268 = vmatpush1.bf16.msra.mxu0 0
    %269 = vmatprep.mubr.bf16.mxu0 0
    %270 = vmatmul.mubr.bf16.gmra.mrb[0].mxu0 %v235
    %v271 = vpop.f32.mrb[0].mxu0
    %v272 = vadd.f32 %v208, %v271
    %v273 = vpop.f32.mrb[0].mxu0
    %v274 = vpop.f32.mrb[0].mxu0
    %v275 = vpop.f32.mrb[0].mxu0
    %276 = vdwg.mxu0
    %277 = vst [vmem:[#allocation9] sm:$0xff] %v272
    // Predicated region
    $region50: #{tpu_custom_call.1} parent=1 // pred_check
      _
    $region51: #{tpu_custom_call.1} parent=1 // pred_check_branch
      %279 = sbr.rel (0) target = $region53
    $region52: #{tpu_custom_call.1} parent=1 // pred_region
      %s281 = ssub.s32 128, 128
      %282 = vsyncadd [#allocation5], %s281
      %s284 = sshll.u32 [#allocation9], 4
      %s285 = int_to_ptr.vmem [resolvable:$true] %s284
      %287 = dma.vmem_to_hbm [thread:$0]  %s285, 128, %s9, [#allocation5]
    $region53: #{tpu_custom_call.1} parent=1 // pred_fallthru
      _
    // Predicated region
    $region54: #{tpu_custom_call.1} parent=1 // pred_check
      _
    $region55: #{tpu_custom_call.1} parent=1 // pred_check_branch
      %289 = sbr.rel (0) target = $region57
    $region56: #{tpu_custom_call.1} parent=1 // pred_region
      %290 = dma.done [#allocation5], 128
    $region57: #{tpu_custom_call.1} parent=1 // pred_fallthru
      _
    %291 = vsyncpa [#allocation4], 1
    %292 = vsyncpa [#allocation7], 1
    %293 = vsyncpa [#allocation5], 1

</llo_original>
